<compile_context>
chip_gen: v7x
topology: tpu7x:2x2x1
jax: 0.10.0
libtpu: 0.0.40
codegen_flags: <defaults>
</compile_context>

<pallas_src>
import functools

import jax
import jax.numpy as jnp
from jax import lax
from jax.experimental import pallas as pl
from jax.experimental.pallas import tpu as pltpu

_MIB = 1024 * 1024
# Conservative live-VMEM budget for the double-buffered tiles.  v7x has only
# 64 MiB physical VMEM per TensorCore (v5e/v6e: 128 MiB), so keep <= ~40 MiB.
_DEFAULT_VMEM_BUDGET = 40 * _MIB

_ACTIVATIONS = ('none', 'relu', 'lrelu', 'sigmoid', 'tanh')


def _round_up(x, m):
    return ((x + m - 1) // m) * m


def _pick_tile(dim, base, cap, min_tile):
    """Return (tile, padded_dim).

    tile is a multiple of `base`, <= cap, and divides padded_dim.  padded_dim
    is dim rounded up to `base` granularity unless no reasonable divisor
    exists, in which case we fall back to padding to a multiple of the cap.
    """
    padded = _round_up(dim, base)
    if padded <= cap:
        return padded, padded
    t = (cap // base) * base
    while t >= base:
        if padded % t == 0 and t >= min_tile:
            return t, padded
        t -= base
    t = (cap // base) * base
    return t, _round_up(padded, t)


def _apply_activation(y, acti_fn, negative_slope):
    if acti_fn == 'none':
        return y
    if acti_fn == 'relu':
        return jnp.maximum(y, 0.0)
    if acti_fn == 'lrelu':
        return jnp.where(y >= 0.0, y, negative_slope * y)
    if acti_fn == 'sigmoid':
        return jax.nn.sigmoid(y)
    if acti_fn == 'tanh':
        return jnp.tanh(y)
    raise ValueError(acti_fn)


def _matmul_nt(x, w):
    # x: (tm, tk), w: (tn, tk) -> (tm, tn).  Contract the shared K axis so the
    # weight can stay in its native PyTorch (n_out, n_in) layout (no wrapper
    # transpose / extra HBM round-trip).
    return lax.dot_general(
        x, w,
        dimension_numbers=(((1,), (1,)), ((), ())),
        preferred_element_type=jnp.float32)


def _kernel_single_k(x_ref, w_ref, *refs, acti_fn, use_bias, negative_slope):
    """Whole K in one block: dot + bias + activation, no accumulator."""
    if use_bias:
        b_ref, o_ref = refs
    else:
        (o_ref,) = refs
    y = _matmul_nt(x_ref[...], w_ref[...])
    if use_bias:
        y = y + b_ref[...].astype(jnp.float32)
    o_ref[...] = _apply_activation(y, acti_fn, negative_slope).astype(o_ref.dtype)


def _kernel_k_reduce(x_ref, w_ref, *refs, acti_fn, use_bias, negative_slope):
    """K reduction over grid axis 2 with a resident f32 accumulator."""
    if use_bias:
        b_ref, o_ref, acc_ref = refs
    else:
        o_ref, acc_ref = refs
    k = pl.program_id(2)

    @pl.when(k == 0)
    def _():
        acc_ref[...] = jnp.zeros_like(acc_ref)

    acc_ref[...] += _matmul_nt(x_ref[...], w_ref[...])

    @pl.when(k == pl.num_programs(2) - 1)
    def _():
        y = acc_ref[...]
        if use_bias:
            y = y + b_ref[...].astype(jnp.float32)
        o_ref[...] = _apply_activation(y, acti_fn, negative_slope).astype(o_ref.dtype)


def linear_block(x, weight, bias=None, *, norm_fn='none', acti_fn='none',
                 compute_dtype=None, negative_slope=0.01,
                 vmem_budget_bytes=_DEFAULT_VMEM_BUDGET):
    """Forward of LinearBlock.

    x:      (B, n_in)
    weight: (n_out, n_in)   -- PyTorch nn.Linear layout (used as-is, no transpose)
    bias:   (n_out,) or None
    compute_dtype: optional dtype (e.g. jnp.bfloat16) for the matmul operands;
                   the epilogue and output stay in x.dtype.
    """
    if norm_fn != 'none':
        # TODO(synk): BatchNorm1d / InstanceNorm1d / SwitchNorm1d branches are
        # not implemented; only norm_fn='none' (bias=True) is.
        raise NotImplementedError(f"norm_fn={norm_fn!r} not implemented")
    if acti_fn not in _ACTIVATIONS:
        raise ValueError(f"Unsupported activation function: {acti_fn}")

    M, K = x.shape
    N, K2 = weight.shape
    assert K == K2, (K, K2)
    use_bias = bias is not None
    out_dtype = x.dtype
    in_dtype = jnp.dtype(compute_dtype) if compute_dtype is not None else jnp.dtype(x.dtype)

    in_item = in_dtype.itemsize
    out_item = jnp.dtype(out_dtype).itemsize
    bias_item = jnp.dtype(bias.dtype).itemsize if use_bias else 0
    # Sublane granularity depends on operand packing (f32: 8, bf16: 16, 8-bit: 32).
    base_m = {4: 8, 2: 16, 1: 32}.get(in_item, 8)

    # --- tile selection -----------------------------------------------------
    # Small-M (GEMV-like fc head): don't tile M; stream the weight with wide
    # lane-dense tiles instead.
    small_m = _round_up(M, base_m) <= 64
    cap_m = 512
    cap_n = 1024 if small_m else 512
    cap_k = 2048 if small_m else 1024

    tm, Mp = _pick_tile(M, base_m, cap_m, 32)
    tn, Np = _pick_tile(N, 128, cap_n, 128)
    Kp = _round_up(K, 128)

    # Collapse the K reduction axis entirely when full-K tiles fit the budget.
    flat_bytes = (2 * tm * Kp * in_item + 2 * tn * Kp * in_item
                  + 2 * tm * tn * out_item + 2 * tn * bias_item)
    collapse_k = flat_bytes <= vmem_budget_bytes
    if collapse_k:
        tk = Kp
        footprint = flat_bytes
    else:
        tk, Kp = _pick_tile(K, 128, cap_k, 128)
        footprint = (2 * tm * tk * in_item + 2 * tn * tk * in_item
                     + 2 * tm * tn * out_item + tm * tn * 4 + 2 * tn * bias_item)

    # v7x megacore: give the parallel grid axes >= 2 blocks when possible so
    # both TensorCores get work.
    if Mp // tm == 1 and Np // tn == 1 and Np >= 256:
        t = (Np // 2 // 128) * 128
        while t >= 128 and Np % t != 0:
            t -= 128
        if t >= 128:
            tn = t

    # --- pad / cast operands (pure XLA, minimal (8/16,128) granularity) ------
    xp = x if in_dtype == x.dtype else x.astype(in_dtype)
    if (Mp, Kp) != (M, K):
        xp = jnp.pad(xp, ((0, Mp - M), (0, Kp - K)))
    wp = weight if in_dtype == weight.dtype else weight.astype(in_dtype)
    if (Np, Kp) != (N, K):
        wp = jnp.pad(wp, ((0, Np - N), (0, Kp - K)))

    # --- grid / specs ---------------------------------------------------------
    if collapse_k:
        grid = (Mp // tm, Np // tn)
        x_spec = pl.BlockSpec((tm, Kp), lambda i, j: (i, 0))
        w_spec = pl.BlockSpec((tn, Kp), lambda i, j: (j, 0))
        b_spec = pl.BlockSpec((1, tn), lambda i, j: (0, j))
        o_spec = pl.BlockSpec((tm, tn), lambda i, j: (i, j))
        semantics = ("parallel", "parallel")
        scratch = []
        body = _kernel_single_k
    else:
        grid = (Mp // tm, Np // tn, Kp // tk)
        x_spec = pl.BlockSpec((tm, tk), lambda i, j, k: (i, k))
        w_spec = pl.BlockSpec((tn, tk), lambda i, j, k: (j, k))
        b_spec = pl.BlockSpec((1, tn), lambda i, j, k: (0, j))
        o_spec = pl.BlockSpec((tm, tn), lambda i, j, k: (i, j))
        semantics = ("parallel", "parallel", "arbitrary")
        scratch = [pltpu.VMEM((tm, tn), jnp.float32)]
        body = _kernel_k_reduce

    operands = [xp, wp]
    in_specs = [x_spec, w_spec]
    if use_bias:
        bp = bias if Np == N else jnp.pad(bias, (0, Np - N))
        operands.append(bp.reshape(1, Np))
        in_specs.append(b_spec)

    kernel = functools.partial(body, acti_fn=acti_fn, use_bias=use_bias,
                               negative_slope=negative_slope)

    cost = pl.CostEstimate(
        flops=2 * Mp * Np * Kp,
        transcendentals=Mp * Np if acti_fn in ('sigmoid', 'tanh') else 0,
        bytes_accessed=(Mp * Kp + Np * Kp) * in_item + Mp * Np * out_item
                       + Np * bias_item)

    vmem_limit = int(min(56 * _MIB, max(32 * _MIB, footprint + 8 * _MIB)))

    out = pl.pallas_call(
        kernel,
        out_shape=jax.ShapeDtypeStruct((Mp, Np), out_dtype),
        grid_spec=pltpu.PrefetchScalarGridSpec(
            num_scalar_prefetch=0,
            grid=grid,
            in_specs=in_specs,
            out_specs=o_spec,
            scratch_shapes=scratch,
        ),
        compiler_params=pltpu.CompilerParams(
            dimension_semantics=semantics,
            vmem_limit_bytes=vmem_limit,
        ),
        cost_estimate=cost,
    )(*operands)

    return out[:M, :N]


def _ref_forward(x, weight, bias, acti_fn):
    y = x @ weight.T
    if bias is not None:
        y = y + bias
    return _apply_activation(y, acti_fn, 0.01)


if __name__ == "__main__":
    key = jax.random.PRNGKey(0)
    k1, k2, k3, k4, k5, k6 = jax.random.split(key, 6)

    # Case 1: discriminator fc-head shape (batch=2, n_in=32, n_out=64).
    # Exercises the collapsed-K single-matmul path, all activations.
    B, n_in, n_out = 2, 32, 64
    x = jax.random.normal(k1, (B, n_in), dtype=jnp.float32)
    w = 0.1 * jax.random.normal(k2, (n_out, n_in), dtype=jnp.float32)
    b = 0.1 * jax.random.normal(k3, (n_out,), dtype=jnp.float32)
    for acti in _ACTIVATIONS:
        y = jax.block_until_ready(
            linear_block(x, w, b, norm_fn='none', acti_fn=acti))
        ref = _ref_forward(x, w, b, acti)
        assert y.shape == (B, n_out), (acti, y.shape)
        assert y.dtype == x.dtype
        assert jnp.allclose(y, ref, atol=2e-3, rtol=2e-3), (
            acti, float(jnp.max(jnp.abs(y - ref))))

    # Case 2: odd shapes + forced K-reduction path (tiny VMEM budget forces
    # multiple K grid steps with the resident accumulator).
    M2, K2_, N2 = 72, 2600, 200
    x2 = jax.random.normal(k4, (M2, K2_), dtype=jnp.float32)
    w2 = 0.05 * jax.random.normal(k5, (N2, K2_), dtype=jnp.float32)
    b2 = 0.1 * jax.random.normal(k6, (N2,), dtype=jnp.float32)
    y2 = jax.block_until_ready(
        linear_block(x2, w2, b2, acti_fn='lrelu', vmem_budget_bytes=1 * _MIB))
    ref2 = _ref_forward(x2, w2, b2, 'lrelu')
    assert y2.shape == (M2, N2)
    assert jnp.allclose(y2, ref2, atol=5e-2, rtol=2e-2), float(
        jnp.max(jnp.abs(y2 - ref2)))

    # Case 3: bf16 compute path (v6e/v7x MXU-native), f32 output, loose tol.
    y3 = jax.block_until_ready(
        linear_block(x, w, b, acti_fn='tanh', compute_dtype=jnp.bfloat16))
    ref3 = _ref_forward(x, w, b, 'tanh')
    assert y3.dtype == x.dtype
    assert jnp.allclose(y3, ref3, atol=5e-2, rtol=5e-2), float(
        jnp.max(jnp.abs(y3 - ref3)))

    # Case 4: no-bias wrapper path (no dummy bias operand is passed).
    y4 = jax.block_until_ready(linear_block(x, w, None, acti_fn='relu'))
    ref4 = _ref_forward(x, w, None, 'relu')
    assert jnp.allclose(y4, ref4, atol=2e-3, rtol=2e-3), float(
        jnp.max(jnp.abs(y4 - ref4)))

    print("KERNEL_OK")
</pallas_src>

<mosaic_0001>
module attributes {stable_mosaic.version = 11 : i64} {
  func.func @_kernel_single_k(%arg0: i32, %arg1: i32, %arg2: memref<8x128xf32, #tpu.memory_space<vmem>>, %arg3: memref<128x128xf32, #tpu.memory_space<vmem>>, %arg4: memref<1x128xf32, #tpu.memory_space<vmem>>, %arg5: memref<8x128xf32, #tpu.memory_space<vmem>>) attributes {dimension_semantics = [#tpu.dimension_semantics<parallel>, #tpu.dimension_semantics<parallel>], iteration_bounds = array<i64: 1, 1>, scalar_prefetch = 0 : i64, scratch_operands = 0 : i64, tpu.core_type = #tpu.core_type<tc>, window_params = [{transform_indices = @transform_0, window_bounds = array<i64: 8, 128>}, {transform_indices = @transform_1, window_bounds = array<i64: 128, 128>}, {transform_indices = @transform_2, window_bounds = array<i64: 1, 128>}, {transform_indices = @transform_3, window_bounds = array<i64: 8, 128>}]} {
    %c0 = arith.constant 0 : index
    %c0_0 = arith.constant 0 : index
    %0 = vector.load %arg2[%c0, %c0_0] : memref<8x128xf32, #tpu.memory_space<vmem>>, vector<8x128xf32>
    %c0_1 = arith.constant 0 : index
    %c0_2 = arith.constant 0 : index
    %1 = vector.load %arg3[%c0_1, %c0_2] : memref<128x128xf32, #tpu.memory_space<vmem>>, vector<128x128xf32>
    %cst = arith.constant dense<0.000000e+00> : vector<8x128xf32>
    %2 = tpu.matmul %0, %1, %cst {dimension_numbers = #tpu.dot_dimension_numbers<[1], [1], [0], [0], [0, 0, 1, 0], [], []>} : vector<8x128xf32>, vector<128x128xf32>, vector<8x128xf32> -> vector<8x128xf32>
    %c0_3 = arith.constant 0 : index
    %c0_4 = arith.constant 0 : index
    %3 = vector.load %arg4[%c0_3, %c0_4] : memref<1x128xf32, #tpu.memory_space<vmem>>, vector<1x128xf32>
    %4 = vector.broadcast %3 : vector<1x128xf32> to vector<8x128xf32>
    %5 = arith.addf %2, %4 : vector<8x128xf32>
    %c0_5 = arith.constant 0 : index
    %c0_6 = arith.constant 0 : index
    %6 = vector.load %arg5[%c0_5, %c0_6] : memref<8x128xf32, #tpu.memory_space<vmem>>, vector<8x128xf32>
    tpu.vector_store %arg5[%c0_5, %c0_6], %5 {strides = array<i32>} : memref<8x128xf32, #tpu.memory_space<vmem>>, vector<8x128xf32>,
    return
  }
  func.func @transform_0(%arg0: i32, %arg1: i32) -> (i32, i32) {
    %c0_i32 = arith.constant 0 : i32
    %c0_i32_0 = arith.constant 0 : i32
    return %arg0, %c0_i32 : i32, i32
  }
  func.func @transform_1(%arg0: i32, %arg1: i32) -> (i32, i32) {
    %c0_i32 = arith.constant 0 : i32
    %c0_i32_0 = arith.constant 0 : i32
    return %arg1, %c0_i32 : i32, i32
  }
  func.func @transform_2(%arg0: i32, %arg1: i32) -> (i32, i32) {
    %c0_i32 = arith.constant 0 : i32
    %c0_i32_0 = arith.constant 0 : i32
    return %c0_i32, %arg1 : i32, i32
  }
  func.func @transform_3(%arg0: i32, %arg1: i32) -> (i32, i32) {
    %c0_i32 = arith.constant 0 : i32
    return %arg0, %arg1 : i32, i32
  }
}

</mosaic_0001>

<llo_original>
// kernel: tpu_custom_call.1
$region0: #{tpu_custom_call.1}
  #allocation0 [shape = 'u32[]', space=smem, size = 0x4, offset = 0x4, fixed_abs, tag = 'smem constant byte address 0x4 - core index']
  #allocation1 [shape = 'u32[144,128]{1,0:T(1,128)}', space=vmem, size = 0x12000, scoped, tag = 'internal scratch']
  %s0 = inlined_call_operand.hbm [shape: f32[8,128], index: 0, kind: input, shape index: {}]
  %s1 = inlined_call_operand.hbm [shape: f32[128,128], index: 1, kind: input, shape index: {}]
  %s2 = inlined_call_operand.vmem [shape: f32[1,128], index: 2, kind: input, shape index: {}]
  %s3 = inlined_call_operand.hbm [shape: f32[8,128], index: 3, kind: output, shape index: {}]
  %s4 = sld [smem:[#allocation0]]
  $region30: #{tpu_custom_call.1} parent=0
    _
  %s6 = ssub.s32 1, %s4
  %s7 = scalar_select 0, %s6, %s4
  $region1: #{tpu_custom_call.1} parent=0
    #allocation2 [shape = 'u8[4096]{0}', space=vmem, size = 0x1000, scoped, tag = 'input window, operand 0, single buffered']
    #allocation3 [shape = 's32[1]{0}', space=sflag, size = 0x4, scoped, tag = 'scoped memory for tpu_custom_call.1']
    #allocation4 [shape = 's32[1]{0}', space=sflag, size = 0x4, scoped, tag = 'scoped memory for tpu_custom_call.1']
    #allocation5 [shape = 'u8[65536]{0}', space=vmem, size = 0x10000, scoped, tag = 'input window, operand 1, single buffered']
    #allocation6 [shape = 's32[1]{0}', space=sflag, size = 0x4, scoped, tag = 'scoped memory for tpu_custom_call.1']
    #allocation7 [shape = 'u8[4096]{0}', space=vmem, size = 0x1000, scoped, tag = 'output window, operand 0, single buffered']
    %8 = vsyncpa [#allocation3], 0
    %9 = vsyncpa [#allocation6], 0
    %10 = vsyncpa [#allocation4], 0
    // Predicated region
    $region2: #{tpu_custom_call.1} parent=1 // pred_check
      _
    $region3: #{tpu_custom_call.1} parent=1 // pred_check_branch
      %12 = sbr.rel (0) target = $region5
    $region4: #{tpu_custom_call.1} parent=1 // pred_region
      %s14 = ssub.s32 128, 128
      %15 = vsyncadd [#allocation3], %s14
      %s17 = sshll.u32 [#allocation2], 4
      %s18 = int_to_ptr.vmem [resolvable:$true] %s17
      %20 = dma.hbm_to_vmem [thread:$0]  %s0, 128, %s18, [#allocation3]
    $region5: #{tpu_custom_call.1} parent=1 // pred_fallthru
      _
    // Predicated region
    $region6: #{tpu_custom_call.1} parent=1 // pred_check
      _
    $region7: #{tpu_custom_call.1} parent=1 // pred_check_branch
      %22 = sbr.rel (0) target = $region9
    $region8: #{tpu_custom_call.1} parent=1 // pred_region
      %s24 = ssub.s32 2048, 2048
      %25 = vsyncadd [#allocation6], %s24
      %s26 = sshll.u32 [#allocation5], 4
      %s27 = int_to_ptr.vmem [resolvable:$true] %s26
      %32 = dma.hbm_to_vmem [thread:$0]  %s1, 2048, %s27, [#allocation6], 128, 128, 8
    $region9: #{tpu_custom_call.1} parent=1 // pred_fallthru
      _
    // Predicated region
    $region10: #{tpu_custom_call.1} parent=1 // pred_check
      _
    $region11: #{tpu_custom_call.1} parent=1 // pred_check_branch
      %34 = sbr.rel (0) target = $region13
    $region12: #{tpu_custom_call.1} parent=1 // pred_region
      _
    $region13: #{tpu_custom_call.1} parent=1 // pred_fallthru
      _
    // Predicated region
    $region14: #{tpu_custom_call.1} parent=1 // pred_check
      _
    $region15: #{tpu_custom_call.1} parent=1 // pred_check_branch
      %36 = sbr.rel (0) target = $region17
    $region16: #{tpu_custom_call.1} parent=1 // pred_region
      %37 = dma.done [#allocation3], 128
    $region17: #{tpu_custom_call.1} parent=1 // pred_fallthru
      _
    // Predicated region
    $region18: #{tpu_custom_call.1} parent=1 // pred_check
      _
    $region19: #{tpu_custom_call.1} parent=1 // pred_check_branch
      %39 = sbr.rel (0) target = $region21
    $region20: #{tpu_custom_call.1} parent=1 // pred_region
      %40 = dma.done [#allocation6], 2048
    $region21: #{tpu_custom_call.1} parent=1 // pred_fallthru
      _
    %v41 = vld [vmem:[#allocation2] sm:$0xff]
    %v42 = vld [vmem:[#allocation5] sm:$0xff]
    %v43 = vld [vmem:[#allocation5 + $0x8] sm:$0xff]
    %v44 = vld [vmem:[#allocation5 + $0x10] sm:$0xff]
    %v45 = vld [vmem:[#allocation5 + $0x18] sm:$0xff]
    %v46 = vld [vmem:[#allocation5 + $0x20] sm:$0xff]
    %v47 = vld [vmem:[#allocation5 + $0x28] sm:$0xff]
    %v48 = vld [vmem:[#allocation5 + $0x30] sm:$0xff]
    %v49 = vld [vmem:[#allocation5 + $0x38] sm:$0xff]
    %v50 = vld [vmem:[#allocation5 + $0x40] sm:$0xff]
    %v51 = vld [vmem:[#allocation5 + $0x48] sm:$0xff]
    %v52 = vld [vmem:[#allocation5 + $0x50] sm:$0xff]
    %v53 = vld [vmem:[#allocation5 + $0x58] sm:$0xff]
    %v54 = vld [vmem:[#allocation5 + $0x60] sm:$0xff]
    %v55 = vld [vmem:[#allocation5 + $0x68] sm:$0xff]
    %v56 = vld [vmem:[#allocation5 + $0x70] sm:$0xff]
    %v57 = vld [vmem:[#allocation5 + $0x78] sm:$0xff]
    %v58 = vld [vmem:[%s2] sm:$0x1]
    %v60 = vlaneseq
    %v61 = vshrl.u32 %v60, 7
    %v62 = vsub.s32 0, %v61
    %v63 = vrot.slane %v58, %v62
    %65 = vmatprep.subr.mxu0 0.0
    %66 = vmatpush1.xpose.msra.mxu0 %v42
    %67 = vmatprep.subr.mxu0 0.0
    %68 = vmatpush1.xpose.msra.mxu0 %v43
    %69 = vmatprep.subr.mxu0 0.0
    %70 = vmatpush1.xpose.msra.mxu0 %v44
    %71 = vmatprep.subr.mxu0 0.0
    %72 = vmatpush1.xpose.msra.mxu0 %v45
    %73 = vmatprep.subr.mxu0 0.0
    %74 = vmatpush1.xpose.msra.mxu0 %v46
    %75 = vmatprep.subr.mxu0 0.0
    %76 = vmatpush1.xpose.msra.mxu0 %v47
    %77 = vmatprep.subr.mxu0 0.0
    %78 = vmatpush1.xpose.msra.mxu0 %v48
    %79 = vmatprep.subr.mxu0 0.0
    %80 = vmatpush1.xpose.msra.mxu0 %v49
    %81 = vmatprep.subr.mxu0 0.0
    %82 = vmatpush1.xpose.msra.mxu0 %v50
    %83 = vmatprep.subr.mxu0 0.0
    %84 = vmatpush1.xpose.msra.mxu0 %v51
    %85 = vmatprep.subr.mxu0 0.0
    %86 = vmatpush1.xpose.msra.mxu0 %v52
    %87 = vmatprep.subr.mxu0 0.0
    %88 = vmatpush1.xpose.msra.mxu0 %v53
    %89 = vmatprep.subr.mxu0 0.0
    %90 = vmatpush1.xpose.msra.mxu0 %v54
    %91 = vmatprep.subr.mxu0 0.0
    %92 = vmatpush1.xpose.msra.mxu0 %v55
    %93 = vmatprep.subr.mxu0 0.0
    %94 = vmatpush1.xpose.msra.mxu0 %v56
    %95 = vmatprep.subr.mxu0 0.0
    %96 = vmatpush1.xpose.msra.mxu0 %v57
    %97 = vmatprep.subr.mxu0 0.0
    %98 = vmatpush1.xpose.msra.mxu0 0.0
    %99 = vmatprep.subr.mxu0 0.0
    %100 = vmatpush1.xpose.msra.mxu0 0.0
    %101 = vmatprep.subr.mxu0 0.0
    %102 = vmatpush1.xpose.msra.mxu0 0.0
    %103 = vmatprep.subr.mxu0 0.0
    %104 = vmatpush1.xpose.msra.mxu0 0.0
    %105 = vmatprep.subr.mxu0 0.0
    %106 = vmatpush1.xpose.msra.mxu0 0.0
    %107 = vmatprep.subr.mxu0 0.0
    %108 = vmatpush1.xpose.msra.mxu0 0.0
    %109 = vmatprep.subr.mxu0 0.0
    %110 = vmatpush1.xpose.msra.mxu0 0.0
    %111 = vmatprep.subr.mxu0 0.0
    %112 = vmatpush1.xpose.msra.mxu0 0.0
    %113 = vmatprep.subr.mxu0 0.0
    %114 = vmatpush1.xpose.msra.mxu0 0.0
    %115 = vmatprep.subr.mxu0 0.0
    %116 = vmatpush1.xpose.msra.mxu0 0.0
    %117 = vmatprep.subr.mxu0 0.0
    %118 = vmatpush1.xpose.msra.mxu0 0.0
    %119 = vmatprep.subr.mxu0 0.0
    %120 = vmatpush1.xpose.msra.mxu0 0.0
    %121 = vmatprep.subr.mxu0 0.0
    %122 = vmatpush1.xpose.msra.mxu0 0.0
    %123 = vmatprep.subr.mxu0 0.0
    %124 = vmatpush1.xpose.msra.mxu0 0.0
    %125 = vmatprep.subr.mxu0 0.0
    %126 = vmatpush1.xpose.msra.mxu0 0.0
    %127 = vmatprep.subr.mxu0 0.0
    %128 = vmatpush1.xpose.msra.mxu0 0.0
    %129 = vmatprep.mubr.f32.mxu0 0.0
    %130 = vmatmul.mubr.f32.gmra.mrb[0].mxu0 %v41
    %v131 = vpop.f32.mrb[0].mxu0
    %v132 = vadd.f32 %v63, %v131
    %v133 = vpop.f32.mrb[0].mxu0
    %134 = vdwg.mxu0
    %135 = vst [vmem:[#allocation7] sm:$0xff] %v132
    // Predicated region
    $region22: #{tpu_custom_call.1} parent=1 // pred_check
      _
    $region23: #{tpu_custom_call.1} parent=1 // pred_check_branch
      %137 = sbr.rel (0) target = $region25
    $region24: #{tpu_custom_call.1} parent=1 // pred_region
      %s139 = ssub.s32 128, 128
      %140 = vsyncadd [#allocation4], %s139
      %s142 = sshll.u32 [#allocation7], 4
      %s143 = int_to_ptr.vmem [resolvable:$true] %s142
      %145 = dma.vmem_to_hbm [thread:$0]  %s143, 128, %s3, [#allocation4]
    $region25: #{tpu_custom_call.1} parent=1 // pred_fallthru
      _
    // Predicated region
    $region26: #{tpu_custom_call.1} parent=1 // pred_check
      _
    $region27: #{tpu_custom_call.1} parent=1 // pred_check_branch
      %147 = sbr.rel (0) target = $region29
    $region28: #{tpu_custom_call.1} parent=1 // pred_region
      %148 = dma.done [#allocation4], 128
    $region29: #{tpu_custom_call.1} parent=1 // pred_fallthru
      _
    %149 = vsyncpa [#allocation3], 1
    %150 = vsyncpa [#allocation6], 1
    %151 = vsyncpa [#allocation4], 1

</llo_original>
